<compile_context>
chip_gen: v5e
topology: v5e:2x2
jax: 0.10.0
libtpu: 0.0.40
codegen_flags: <defaults>
</compile_context>

<pallas_src>
import functools

import jax
import jax.numpy as jnp
from jax.experimental import pallas as pl
from jax.experimental.pallas import tpu as pltpu


def _merge_kernel(x1_ref, x2_ref, g_ref, o_ref, *, w):
    f32 = jnp.float32
    x1 = x1_ref[...].astype(f32)          # (1, tile_c, tile_n)
    x2 = x2_ref[...].astype(f32)          # (1, tile_c, tile_n)
    # g_ref is (1, 1, tile_n) when gt_pre has a single channel; it broadcasts
    # across the channel (sublane) axis for free inside the VPU expression.
    gate = w * jax.nn.sigmoid(g_ref[...].astype(f32))
    o_ref[...] = (x1 + x2 + gate * x2).astype(o_ref.dtype)


def merge(x1, x2, gt_pre, w, *, target_tile_bytes=2 << 20):
    """x1, x2: (B, C, H, W); gt_pre: (B, 1, H, W) or (B, C, H, W); w: scalar."""
    B, C, H, W = x1.shape
    N = H * W
    dtype = x1.dtype
    itemsize = jnp.dtype(dtype).itemsize

    # Lane-dense 3-D slabs: spatial flattened onto the 128-lane axis.
    x1r = x1.reshape(B, C, N)
    x2r = x2.reshape(B, C, N)
    gt_c = gt_pre.shape[1]
    gtr = gt_pre.reshape(B, gt_c, N)

    # Channel tile: full C (typical EGE-UNet channel counts are tiny), else a
    # multiple of 8 to satisfy the sublane constraint.
    tile_c = C if C <= 512 else 512

    # Lane tile: as large as the per-operand VMEM budget allows, multiple of
    # 128 (unmasked vst), or the full spatial extent when it fits.
    max_tile_n = max(128, (target_tile_bytes // (itemsize * tile_c)) // 128 * 128)
    tile_n = N if N <= max_tile_n else max_tile_n

    grid = (B, pl.cdiv(C, tile_c), pl.cdiv(N, tile_n))

    x_spec = pl.BlockSpec((1, tile_c, tile_n), lambda b, c, j: (b, c, j))
    if gt_c == 1:
        # Un-broadcast gate: same tile re-read for every channel block.
        g_spec = pl.BlockSpec((1, 1, tile_n), lambda b, c, j: (b, 0, j))
    else:
        # gt_pre already has per-channel values; tile it like x.
        g_spec = x_spec

    kernel = functools.partial(_merge_kernel, w=float(w))

    out = pl.pallas_call(
        kernel,
        out_shape=jax.ShapeDtypeStruct((B, C, N), dtype),
        grid_spec=pl.GridSpec(
            grid=grid,
            in_specs=[x_spec, x_spec, g_spec],
            out_specs=x_spec,
        ),
        compiler_params=pltpu.CompilerParams(
            dimension_semantics=("parallel", "parallel", "parallel"),
            # Double-buffered footprint at the 2 MiB tile target is ~13 MiB;
            # raise the scoped limit past v5e's 16 MiB default while staying
            # comfortably under v7x's 64 MiB physical VMEM.
            vmem_limit_bytes=48 << 20,
        ),
    )(x1r, x2r, gtr)

    return out.reshape(B, C, H, W)


def merge_ref(x1, x2, gt_pre, w):
    return x1 + x2 + jax.nn.sigmoid(gt_pre) * x2 * w


if __name__ == "__main__":
    key = jax.random.PRNGKey(0)
    k1, k2, k3 = jax.random.split(key, 3)

    B, C, H, W = 2, 4, 16, 16
    x1 = jax.random.normal(k1, (B, C, H, W), dtype=jnp.float32)
    x2 = jax.random.normal(k2, (B, C, H, W), dtype=jnp.float32)
    gt_pre = jax.random.normal(k3, (B, 1, H, W), dtype=jnp.float32)
    w = 0.5  # deterministic merge weight (as used in EGE-UNet deep supervision)

    out = merge(x1, x2, gt_pre, w)
    out = jax.block_until_ready(out)

    ref = merge_ref(x1, x2, gt_pre, w)
    assert out.shape == (B, C, H, W)
    assert jnp.allclose(out, ref, atol=1e-5, rtol=1e-5), "mismatch vs reference"

    print("KERNEL_OK")
</pallas_src>

<mosaic_0001>
module attributes {stable_mosaic.version = 11 : i64} {
  func.func @_merge_kernel(%arg0: i32, %arg1: i32, %arg2: i32, %arg3: memref<1x4x256xf32, #tpu.memory_space<vmem>>, %arg4: memref<1x4x256xf32, #tpu.memory_space<vmem>>, %arg5: memref<1x1x256xf32, #tpu.memory_space<vmem>>, %arg6: memref<1x4x256xf32, #tpu.memory_space<vmem>>) attributes {dimension_semantics = [#tpu.dimension_semantics<parallel>, #tpu.dimension_semantics<parallel>, #tpu.dimension_semantics<parallel>], iteration_bounds = array<i64: 2, 1, 1>, scalar_prefetch = 0 : i64, scratch_operands = 0 : i64, tpu.core_type = #tpu.core_type<tc>, window_params = [{transform_indices = @transform_0, window_bounds = array<i64: 1, 4, 256>}, {transform_indices = @transform_1, window_bounds = array<i64: 1, 4, 256>}, {transform_indices = @transform_2, window_bounds = array<i64: 1, 1, 256>}, {transform_indices = @transform_3, window_bounds = array<i64: 1, 4, 256>}]} {
    %c0 = arith.constant 0 : index
    %c0_0 = arith.constant 0 : index
    %c0_1 = arith.constant 0 : index
    %0 = vector.load %arg3[%c0, %c0_0, %c0_1] : memref<1x4x256xf32, #tpu.memory_space<vmem>>, vector<1x4x256xf32>
    %c0_2 = arith.constant 0 : index
    %c0_3 = arith.constant 0 : index
    %c0_4 = arith.constant 0 : index
    %1 = vector.load %arg4[%c0_2, %c0_3, %c0_4] : memref<1x4x256xf32, #tpu.memory_space<vmem>>, vector<1x4x256xf32>
    %c0_5 = arith.constant 0 : index
    %c0_6 = arith.constant 0 : index
    %c0_7 = arith.constant 0 : index
    %2 = vector.load %arg5[%c0_5, %c0_6, %c0_7] : memref<1x1x256xf32, #tpu.memory_space<vmem>>, vector<1x1x256xf32>
    %3 = arith.negf %2 : vector<1x1x256xf32>
    %4 = math.exp %3 : vector<1x1x256xf32>
    %cst = arith.constant 1.000000e+00 : f32
    %5 = vector.broadcast %cst : f32 to vector<1x1x256xf32>
    %6 = arith.addf %5, %4 : vector<1x1x256xf32>
    %7 = arith.divf %5, %6 : vector<1x1x256xf32>
    %cst_8 = arith.constant 5.000000e-01 : f32
    %8 = vector.broadcast %cst_8 : f32 to vector<1x1x256xf32>
    %9 = arith.mulf %8, %7 : vector<1x1x256xf32>
    %10 = arith.addf %0, %1 : vector<1x4x256xf32>
    %11 = vector.broadcast %9 : vector<1x1x256xf32> to vector<1x4x256xf32>
    %12 = arith.mulf %11, %1 : vector<1x4x256xf32>
    %13 = arith.addf %10, %12 : vector<1x4x256xf32>
    %c0_9 = arith.constant 0 : index
    %c0_10 = arith.constant 0 : index
    %c0_11 = arith.constant 0 : index
    %14 = vector.load %arg6[%c0_9, %c0_10, %c0_11] : memref<1x4x256xf32, #tpu.memory_space<vmem>>, vector<1x4x256xf32>
    tpu.vector_store %arg6[%c0_9, %c0_10, %c0_11], %13 {strides = array<i32>} : memref<1x4x256xf32, #tpu.memory_space<vmem>>, vector<1x4x256xf32>,
    return
  }
  func.func @transform_0(%arg0: i32, %arg1: i32, %arg2: i32) -> (i32, i32, i32) {
    %c0_i32 = arith.constant 0 : i32
    return %arg0, %arg1, %arg2 : i32, i32, i32
  }
  func.func @transform_1(%arg0: i32, %arg1: i32, %arg2: i32) -> (i32, i32, i32) {
    %c0_i32 = arith.constant 0 : i32
    return %arg0, %arg1, %arg2 : i32, i32, i32
  }
  func.func @transform_2(%arg0: i32, %arg1: i32, %arg2: i32) -> (i32, i32, i32) {
    %c0_i32 = arith.constant 0 : i32
    %c0_i32_0 = arith.constant 0 : i32
    return %arg0, %c0_i32, %arg2 : i32, i32, i32
  }
  func.func @transform_3(%arg0: i32, %arg1: i32, %arg2: i32) -> (i32, i32, i32) {
    %c0_i32 = arith.constant 0 : i32
    return %arg0, %arg1, %arg2 : i32, i32, i32
  }
}

</mosaic_0001>

<llo_original>
// kernel: tpu_custom_call.1
$region0: #{tpu_custom_call.1}
  #allocation0 [shape = 'u32[]', space=smem, size = 0x4, offset = 0x4, fixed_abs, tag = 'smem constant byte address 0x4 - core index']
  #allocation1 [shape = 'u32[72,128]{1,0:T(1,128)}', space=vmem, size = 0x9000, scoped, tag = 'internal scratch']
  %s0 = inlined_call_operand.hbm [shape: f32[2,4,256], index: 0, kind: input, shape index: {}]
  %s1 = inlined_call_operand.hbm [shape: f32[2,4,256], index: 1, kind: input, shape index: {}]
  %s2 = inlined_call_operand.hbm [shape: f32[2,1,256], index: 2, kind: input, shape index: {}]
  %s3 = inlined_call_operand.hbm [shape: f32[2,4,256], index: 3, kind: output, shape index: {}]
  %s4 = sld [smem:[#allocation0]]
  $region57: #{tpu_custom_call.1} parent=0
    _
  %s6 = ssub.s32 1, %s4
  %s7 = scalar_select 0, %s6, %s4
  $region1: #{tpu_custom_call.1} parent=0
    #allocation2 [shape = 'u8[8192]{0}', space=vmem, size = 0x2000, scoped, tag = 'input window, operand 0']
    #allocation3 [shape = 's32[2]{0}', space=sflag, size = 0x8, scoped, tag = 'scoped memory for tpu_custom_call.1']
    #allocation4 [shape = 's32[2]{0}', space=sflag, size = 0x8, scoped, tag = 'scoped memory for tpu_custom_call.1']
    #allocation5 [shape = 'u8[8192]{0}', space=vmem, size = 0x2000, scoped, tag = 'input window, operand 1']
    #allocation6 [shape = 's32[2]{0}', space=sflag, size = 0x8, scoped, tag = 'scoped memory for tpu_custom_call.1']
    #allocation7 [shape = 'u8[2048]{0}', space=vmem, size = 0x800, scoped, tag = 'input window, operand 2']
    #allocation8 [shape = 'u8[8192]{0}', space=vmem, size = 0x2000, scoped, tag = 'output window, operand 0']
    %8 = vsyncpa [#allocation3], 0
    %s9 = scalar_lea.sflag [#allocation3], 1
    %10 = vsyncpa %s9, 0
    %11 = vsyncpa [#allocation6], 0
    %s12 = scalar_lea.sflag [#allocation6], 1
    %13 = vsyncpa %s12, 0
    %14 = vsyncpa [#allocation4], 0
    %s15 = scalar_lea.sflag [#allocation4], 1
    %16 = vsyncpa %s15, 0
    loop: start=0, step=1, limit=4
    $region2: #{tpu_custom_call.1} parent=1 // loop_pre_header
      _
    $region3: #{tpu_custom_call.1} parent=1 // loop_header
      %s18 = sphi 0, %s22
      %p19 = scmp.ge.s32.totalorder %s18, 4
      %s25 = sphi 0, %s44
      %s26 = sphi 0, %s40
      %s27 = sphi 0, %s36
      %s28 = sphi 0, %s25
      %s29 = sphi 0, %s26
      %s30 = sphi 0, %s27
      %s31 = sphi 0, %s28
      %s32 = sphi 0, %s29
      %s33 = sphi 0, %s30
      %s51 = sphi 0, %s53
      %s54 = sphi 0, %s51
      %s55 = sphi 0, %s54
      %s71 = sphi 0, %s55
      %s81 = sphi 0, %s83
      %s84 = sphi 0, %s81
      %s85 = sphi 0, %s84
      %s101 = sphi 0, %s85
      %s109 = sphi 0, %s111
      %s112 = sphi 0, %s109
      %s113 = sphi 0, %s112
      %s129 = sphi 0, %s113
      %s139 = sphi 0, %s141
      %s142 = sphi 0, %s139
      %s143 = sphi 0, %s142
      %s159 = sphi 0, %s143
    $region4: #{tpu_custom_call.1} parent=1 // loop_header_branch
      %21 = sbr.rel (%p19) target = $region8
    $region5: #{tpu_custom_call.1} parent=1 // loop_body
      %s23 = ssub.s32 %s18, 1
      %s24 = ssub.s32 %s18, 2
      %s34 = sadd.s32 1, %s27
      %p35 = scmp.ge.s32.totalorder %s34, 1
      %s36 = scalar_select %p35, 0, %s34
      %s37 = sadd.s32 1, %s26
      %s38 = scalar_select %p35, %s37, %s26
      %p39 = scmp.ge.s32.totalorder %s38, 1
      %s40 = scalar_select %p39, 0, %s38
      %s41 = sadd.s32 1, %s25
      %s42 = scalar_select %p39, %s41, %s25
      %p43 = scmp.ge.s32.totalorder %s42, 2
      %s44 = scalar_select %p43, 0, %s42
      %s45 = ssub.s32 %s25, %s44
      %s46 = ssub.s32 %s26, %s40
      %s47 = sor.u32 %s45, %s46
      %s48 = ssub.s32 %s27, %s36
      %s49 = sor.u32 %s47, %s48
      %p50 = scmp.eq.s32.totalorder %s49, 0
      %s52 = sadd.s32 %s51, 1
      %s53 = scalar_select %p50, %s51, %s52
      %p56 = pneg %p50
      %p57 = scmp.eq.s32.totalorder %s18, 1
      %p58 = por %p56, %p57
      %p59 = scmp.ne.s32.totalorder %s51, %s54
      %p60 = scmp.eq.s32.totalorder %s18, 0
      %p61 = por %p59, %p60
      %p62 = scmp.ne.s32.totalorder %s51, %s54
      %p63 = scmp.eq.s32.totalorder %s23, 1
      %p64 = por %p62, %p63
      %p65 = scmp.ne.s32.totalorder %s54, %s55
      %p66 = scmp.eq.s32.totalorder %s23, 0
      %p67 = por %p65, %p66
      %p68 = scmp.ne.s32.totalorder %s54, %s55
      %p69 = scmp.eq.s32.totalorder %s24, 1
      %p70 = por %p68, %p69
      %p72 = scmp.ne.s32.totalorder %s55, %s71
      %p73 = scmp.eq.s32.totalorder %s24, 0
      %p74 = por %p72, %p73
      %s75 = ssub.s32 %s25, %s44
      %s76 = ssub.s32 %s26, %s40
      %s77 = sor.u32 %s75, %s76
      %s78 = ssub.s32 %s27, %s36
      %s79 = sor.u32 %s77, %s78
      %p80 = scmp.eq.s32.totalorder %s79, 0
      %s82 = sadd.s32 %s81, 1
      %s83 = scalar_select %p80, %s81, %s82
      %p86 = pneg %p80
      %p87 = scmp.eq.s32.totalorder %s18, 1
      %p88 = por %p86, %p87
      %p89 = scmp.ne.s32.totalorder %s81, %s84
      %p90 = scmp.eq.s32.totalorder %s18, 0
      %p91 = por %p89, %p90
      %p92 = scmp.ne.s32.totalorder %s81, %s84
      %p93 = scmp.eq.s32.totalorder %s23, 1
      %p94 = por %p92, %p93
      %p95 = scmp.ne.s32.totalorder %s84, %s85
      %p96 = scmp.eq.s32.totalorder %s23, 0
      %p97 = por %p95, %p96
      %p98 = scmp.ne.s32.totalorder %s84, %s85
      %p99 = scmp.eq.s32.totalorder %s24, 1
      %p100 = por %p98, %p99
      %p102 = scmp.ne.s32.totalorder %s85, %s101
      %p103 = scmp.eq.s32.totalorder %s24, 0
      %p104 = por %p102, %p103
      %s105 = ssub.s32 %s25, %s44
      %s106 = ssub.s32 %s27, %s36
      %s107 = sor.u32 %s105, %s106
      %p108 = scmp.eq.s32.totalorder %s107, 0
      %s110 = sadd.s32 %s109, 1
      %s111 = scalar_select %p108, %s109, %s110
      %p114 = pneg %p108
      %p115 = scmp.eq.s32.totalorder %s18, 1
      %p116 = por %p114, %p115
      %p117 = scmp.ne.s32.totalorder %s109, %s112
      %p118 = scmp.eq.s32.totalorder %s18, 0
      %p119 = por %p117, %p118
      %p120 = scmp.ne.s32.totalorder %s109, %s112
      %p121 = scmp.eq.s32.totalorder %s23, 1
      %p122 = por %p120, %p121
      %p123 = scmp.ne.s32.totalorder %s112, %s113
      %p124 = scmp.eq.s32.totalorder %s23, 0
      %p125 = por %p123, %p124
      %p126 = scmp.ne.s32.totalorder %s112, %s113
      %p127 = scmp.eq.s32.totalorder %s24, 1
      %p128 = por %p126, %p127
      %p130 = scmp.ne.s32.totalorder %s113, %s129
      %p131 = scmp.eq.s32.totalorder %s24, 0
      %p132 = por %p130, %p131
      %s133 = ssub.s32 %s25, %s44
      %s134 = ssub.s32 %s26, %s40
      %s135 = sor.u32 %s133, %s134
      %s136 = ssub.s32 %s27, %s36
      %s137 = sor.u32 %s135, %s136
      %p138 = scmp.eq.s32.totalorder %s137, 0
      %s140 = sadd.s32 %s139, 1
      %s141 = scalar_select %p138, %s139, %s140
      %p144 = pneg %p138
      %p145 = scmp.eq.s32.totalorder %s18, 1
      %p146 = por %p144, %p145
      %p147 = scmp.ne.s32.totalorder %s139, %s142
      %p148 = scmp.eq.s32.totalorder %s18, 0
      %p149 = por %p147, %p148
      %p150 = scmp.ne.s32.totalorder %s139, %s142
      %p151 = scmp.eq.s32.totalorder %s23, 1
      %p152 = por %p150, %p151
      %p153 = scmp.ne.s32.totalorder %s142, %s143
      %p154 = scmp.eq.s32.totalorder %s23, 0
      %p155 = por %p153, %p154
      %p156 = scmp.ne.s32.totalorder %s142, %s143
      %p157 = scmp.eq.s32.totalorder %s24, 1
      %p158 = por %p156, %p157
      %p160 = scmp.ne.s32.totalorder %s143, %s159
      %p161 = scmp.eq.s32.totalorder %s24, 0
      %p162 = por %p160, %p161
      %p163 = scmp.le.s32.totalorder 1, %s18
      %p164 = scmp.lt.s32.totalorder %s18, 3
      %p165 = pnand %p163, %p164
      %p166 = pneg %p165
      // Predicated region
      $region9: #{tpu_custom_call.1} parent=5 // pred_check
        _
      $region10: #{tpu_custom_call.1} parent=5 // pred_check_branch
        %168 = sbr.rel (%p165) target = $region12
      $region11: #{tpu_custom_call.1} parent=5 // pred_region
        %s169 = ssub.s32 %s18, 1
      $region12: #{tpu_custom_call.1} parent=5 // pred_fallthru
        _
      %p170 = scmp.lt.s32.totalorder %s18, 2
      // Predicated region
      $region13: #{tpu_custom_call.1} parent=5 // pred_check
        %p171 = pneg %p170
      $region14: #{tpu_custom_call.1} parent=5 // pred_check_branch
        %173 = sbr.rel (%p171) target = $region16
      $region15: #{tpu_custom_call.1} parent=5 // pred_region
        // Predicated region
        $region17: #{tpu_custom_call.1} parent=15 // pred_check
          %p174 = pneg %p61
        $region18: #{tpu_custom_call.1} parent=15 // pred_check_branch
          %176 = sbr.rel (%p174) target = $region20
        $region19: #{tpu_custom_call.1} parent=15 // pred_region
          %s177 = sand.u32 %s51, 1
          %s178 = scalar_lea.sflag [#allocation3], %s177
          %s179 = sand.u32 %s51, 1
          %s180 = smul.addr %s179, 8
          %s181 = scalar_lea.vmem [#allocation2], %s180
          %s182 = smul.u32 2, %s27
          %184 = vsyncadd %s178, 0
          %s185 = smul.addr %s26, 2
          %s186 = sadd.s32 %s182, %s185
          %s187 = smul.addr %s25, 2
          %s188 = sadd.s32 %s186, %s187
          %s189 = smul.addr %s188, 4
          %s190 = scalar_lea.hbm %s0, %s189
          %s192 = sshll.u32 %s190, 4
          %s193 = int_to_ptr.hbm [resolvable:$true] %s192
          %s194 = sshll.u32 %s181, 4
          %s195 = int_to_ptr.vmem [resolvable:$true] %s194
          %197 = dma.hbm_to_vmem [thread:$0]  %s193, 128, %s195, %s178
        $region20: #{tpu_custom_call.1} parent=15 // pred_fallthru
          _
        // Predicated region
        $region21: #{tpu_custom_call.1} parent=15 // pred_check
          %p198 = pneg %p91
        $region22: #{tpu_custom_call.1} parent=15 // pred_check_branch
          %200 = sbr.rel (%p198) target = $region24
        $region23: #{tpu_custom_call.1} parent=15 // pred_region
          %s201 = sand.u32 %s18, 1
          %s202 = scalar_lea.sflag [#allocation6], %s201
          %s203 = sand.u32 %s81, 1
          %s204 = smul.addr %s203, 8
          %s205 = scalar_lea.vmem [#allocation5], %s204
          %s206 = smul.u32 2, %s27
          %208 = vsyncadd %s202, 0
          %s209 = smul.addr %s26, 2
          %s210 = sadd.s32 %s206, %s209
          %s211 = smul.addr %s25, 2
          %s212 = sadd.s32 %s210, %s211
          %s213 = smul.addr %s212, 4
          %s214 = scalar_lea.hbm %s1, %s213
          %s216 = sshll.u32 %s214, 4
          %s217 = int_to_ptr.hbm [resolvable:$true] %s216
          %s218 = sshll.u32 %s205, 4
          %s219 = int_to_ptr.vmem [resolvable:$true] %s218
          %221 = dma.hbm_to_vmem [thread:$0]  %s217, 128, %s219, %s202
        $region24: #{tpu_custom_call.1} parent=15 // pred_fallthru
          _
        // Predicated region
        $region25: #{tpu_custom_call.1} parent=15 // pred_check
          %p222 = pneg %p119
        $region26: #{tpu_custom_call.1} parent=15 // pred_check_branch
          %224 = sbr.rel (%p222) target = $region28
        $region27: #{tpu_custom_call.1} parent=15 // pred_region
          %s225 = sand.u32 %s18, 1
          %s226 = scalar_lea.sflag [#allocation6], %s225
          %s227 = sand.u32 %s109, 1
          %s228 = smul.addr %s227, 2
          %s229 = scalar_lea.vmem [#allocation7], %s228
          %s230 = smul.u32 2, %s27
          %232 = vsyncadd %s226, 0
          %s233 = smul.addr %s25, 2
          %s234 = sadd.s32 %s230, %s233
          %s235 = scalar_lea.hbm %s2, %s234
          %s237 = sshll.u32 %s235, 4
          %s238 = int_to_ptr.hbm [resolvable:$true] %s237
          %s239 = sshll.u32 %s229, 4
          %s240 = int_to_ptr.vmem [resolvable:$true] %s239
          %242 = dma.hbm_to_vmem [thread:$0]  %s238, 32, %s240, %s226
        $region28: #{tpu_custom_call.1} parent=15 // pred_fallthru
          _
      $region16: #{tpu_custom_call.1} parent=5 // pred_fallthru
        _
      %p243 = scmp.le.s32.totalorder 1, %s18
      %p244 = scmp.lt.s32.totalorder %s18, 3
      %p245 = pnand %p243, %p244
      %p246 = pneg %p245
      // Predicated region
      $region29: #{tpu_custom_call.1} parent=5 // pred_check
        _
      $region30: #{tpu_custom_call.1} parent=5 // pred_check_branch
        %248 = sbr.rel (%p245) target = $region32
      $region31: #{tpu_custom_call.1} parent=5 // pred_region
        %s249 = ssub.s32 %s18, 1
        %s250 = sand.u32 %s54, 1
        %s251 = scalar_lea.sflag [#allocation3], %s250
        %s252 = sand.u32 %s54, 1
        %s253 = smul.addr %s252, 8
        %s254 = scalar_lea.vmem [#allocation2], %s253
        // Predicated region
        $region33: #{tpu_custom_call.1} parent=31 // pred_check
          %p255 = pneg %p67
        $region34: #{tpu_custom_call.1} parent=31 // pred_check_branch
          %257 = sbr.rel (%p255) target = $region36
        $region35: #{tpu_custom_call.1} parent=31 // pred_region
          %259 = dma.done %s251, 128
        $region36: #{tpu_custom_call.1} parent=31 // pred_fallthru
          _
        %s260 = sand.u32 %s23, 1
        %s261 = scalar_lea.sflag [#allocation6], %s260
        %s262 = sand.u32 %s84, 1
        %s263 = smul.addr %s262, 8
        %s264 = scalar_lea.vmem [#allocation5], %s263
        // Predicated region
        $region37: #{tpu_custom_call.1} parent=31 // pred_check
          %p265 = pneg %p97
        $region38: #{tpu_custom_call.1} parent=31 // pred_check_branch
          %267 = sbr.rel (%p265) target = $region40
        $region39: #{tpu_custom_call.1} parent=31 // pred_region
          %269 = dma.done %s261, 128
        $region40: #{tpu_custom_call.1} parent=31 // pred_fallthru
          _
        %s270 = sand.u32 %s23, 1
        %s271 = scalar_lea.sflag [#allocation6], %s270
        %s272 = sand.u32 %s112, 1
        %s273 = smul.addr %s272, 2
        %s274 = scalar_lea.vmem [#allocation7], %s273
        // Predicated region
        $region41: #{tpu_custom_call.1} parent=31 // pred_check
          %p275 = pneg %p125
        $region42: #{tpu_custom_call.1} parent=31 // pred_check_branch
          %277 = sbr.rel (%p275) target = $region44
        $region43: #{tpu_custom_call.1} parent=31 // pred_region
          %279 = dma.done %s271, 32
        $region44: #{tpu_custom_call.1} parent=31 // pred_fallthru
          _
        %s280 = sand.u32 %s54, 1
        %s281 = scalar_lea.sflag [#allocation3], %s280
        %s282 = sand.u32 %s54, 1
        %s283 = smul.addr %s282, 8
        %s284 = scalar_lea.vmem [#allocation2], %s283
        %p285 = pneg %p67
        %p286 = pneg %p64
        %s287 = sand.u32 %s23, 1
        %s288 = scalar_lea.sflag [#allocation6], %s287
        %s289 = sand.u32 %s84, 1
        %s290 = smul.addr %s289, 8
        %s291 = scalar_lea.vmem [#allocation5], %s290
        %p292 = pneg %p97
        %p293 = pneg %p94
        %s294 = sand.u32 %s23, 1
        %s295 = scalar_lea.sflag [#allocation6], %s294
        %s296 = sand.u32 %s112, 1
        %s297 = smul.addr %s296, 2
        %s298 = scalar_lea.vmem [#allocation7], %s297
        %p299 = pneg %p125
        %p300 = pneg %p122
        %p301 = pneg %p155
        %p302 = pneg %p152
        %s303 = sand.u32 %s142, 1
        %s304 = scalar_lea.sflag [#allocation4], %s303
        %s305 = sand.u32 %s142, 1
        %s306 = smul.addr %s305, 8
        %s307 = scalar_lea.vmem [#allocation8], %s306
        %s308 = smul.u32 2, %s30
        %s309 = smul.u32 2, %s30
        %s310 = smul.u32 2, %s30
        %s311 = smul.u32 2, %s30
        %v312 = vld [vmem:[%s254] sm:$0xff]
        %v313 = vld [vmem:[%s264] sm:$0xff]
        %v314 = vld [vmem:[%s274] sm:$0x3]
        %v315 = vxor.u32 %v314, 2147483648
        %v316 = vmul.f32 %v315, 1.442695
        %v317 = vpow.pop %v316
        %v318 = vadd.f32 %v317, 1.0
        %v319 = vrcp.pop %v318
        %v320 = vmul.f32 %v318, %v319
        %v321 = vsub.f32 1.0, %v320
        %v322 = vmul.f32 %v319, %v321
        %v323 = vadd.f32 %v319, %v322
        %vm324 = vweird.f32 %v318
        %vm325 = vweird.f32 %v319
        %vm326 = vmor %vm324, %vm325
        %v327 = vsel %vm326, %v319, %v323
        %v328 = vand.u32 2147483647, %v318
        %vm329 = vcmp.eq.f32.partialorder %v328, 8.507059e+37
        %v330 = vand.u32 %v318, 2147483648
        %v331 = vor.u32 1.1754944e-38, %v330
        %v332 = vsel %vm329, %v331, %v327
        %v333 = vmul.f32 1.0, %v332
        %v334 = vmul.f32 %v333, 0.5
        %v335 = vadd.f32 %v312, %v313
        %v337 = vperm.slane %v334, 0
        %v338 = vperm.slane %v334, 1
        %342 = vst [vmem:[#allocation1] ss:$2 sm:$0xff] %v313
        %v343 = vld.sshfl [vmem:[#allocation1] sm:$0xff pattern:$0x75316420]
        %v344 = vld.sshfl [vmem:[#allocation1 + $0x8] sm:$0xff pattern:$0x75316420]
        %v347 = vmul.f32 %v337, %v343
        %v348 = vmul.f32 %v338, %v344
        %v351 = vrot.slane %v348, 4
        %vm352 = vcmask 1043456
        %v353 = vsel %vm352, %v347, %v351
        %v355 = vadd.f32 %v335, %v353
        %356 = vst [vmem:[%s307] sm:$0xff] %v355
        %s357 = sand.u32 %s142, 1
        %s358 = scalar_lea.sflag [#allocation4], %s357
        %s359 = sand.u32 %s142, 1
        %s360 = smul.addr %s359, 8
        %s361 = scalar_lea.vmem [#allocation8], %s360
        // Predicated region
        $region45: #{tpu_custom_call.1} parent=31 // pred_check
          %p362 = pneg %p152
        $region46: #{tpu_custom_call.1} parent=31 // pred_check_branch
          %364 = sbr.rel (%p362) target = $region48
        $region47: #{tpu_custom_call.1} parent=31 // pred_region
          %s365 = smul.u32 2, %s30
          %367 = vsyncadd %s358, 0
          %s368 = smul.addr %s29, 2
          %s369 = sadd.s32 %s365, %s368
          %s370 = smul.addr %s28, 2
          %s371 = sadd.s32 %s369, %s370
          %s372 = smul.addr %s371, 4
          %s373 = scalar_lea.hbm %s3, %s372
          %s375 = sshll.u32 %s361, 4
          %s376 = int_to_ptr.vmem [resolvable:$true] %s375
          %s377 = sshll.u32 %s373, 4
          %s378 = int_to_ptr.hbm [resolvable:$true] %s377
          %380 = dma.vmem_to_hbm [thread:$0]  %s376, 128, %s378, %s358
        $region48: #{tpu_custom_call.1} parent=31 // pred_fallthru
          _
      $region32: #{tpu_custom_call.1} parent=5 // pred_fallthru
        _
      %p381 = scmp.le.s32.totalorder 2, %s18
      // Predicated region
      $region49: #{tpu_custom_call.1} parent=5 // pred_check
        %p382 = pneg %p381
      $region50: #{tpu_custom_call.1} parent=5 // pred_check_branch
        %384 = sbr.rel (%p382) target = $region52
      $region51: #{tpu_custom_call.1} parent=5 // pred_region
        %s385 = ssub.s32 %s18, 2
        // Predicated region
        $region53: #{tpu_custom_call.1} parent=51 // pred_check
          %p386 = pneg %p158
        $region54: #{tpu_custom_call.1} parent=51 // pred_check_branch
          %388 = sbr.rel (%p386) target = $region56
        $region55: #{tpu_custom_call.1} parent=51 // pred_region
          %s389 = sand.u32 %s143, 1
          %s390 = scalar_lea.sflag [#allocation4], %s389
          %s391 = sand.u32 %s143, 1
          %s392 = smul.addr %s391, 8
          %s393 = scalar_lea.vmem [#allocation8], %s392
          %395 = dma.done %s390, 128
        $region56: #{tpu_custom_call.1} parent=51 // pred_fallthru
          _
      $region52: #{tpu_custom_call.1} parent=5 // pred_fallthru
        _
    $region6: #{tpu_custom_call.1} parent=1 // loop_footer
      %s22 = sadd.s32 1, %s18
    $region7: #{tpu_custom_call.1} parent=1 // loop_footer_branch
      %17 = sbr.rel target = $region3
    $region8: #{tpu_custom_call.1} parent=1 // loop_exit
      _
    %396 = vsyncpa [#allocation3], 1
    %s397 = scalar_lea.sflag [#allocation3], 1
    %398 = vsyncpa %s397, 1
    %399 = vsyncpa [#allocation6], 1
    %s400 = scalar_lea.sflag [#allocation6], 1
    %401 = vsyncpa %s400, 1
    %402 = vsyncpa [#allocation4], 1
    %s403 = scalar_lea.sflag [#allocation4], 1
    %404 = vsyncpa %s403, 1

</llo_original>
